<compile_context>
chip_gen: v7x
topology: tpu7x:2x2x1
jax: 0.10.0
libtpu: 0.0.40
codegen_flags: <defaults>
</compile_context>

<pallas_src>
import jax
import jax.numpy as jnp
from jax.experimental import pallas as pl
from jax.experimental.pallas import tpu as pltpu


def _round_up(n, m):
    return ((n + m - 1) // m) * m


def mlp_kernel(x_ref, w1_ref, b1_ref, w2_ref, b2_ref, w3_ref, b3_ref, o_ref):
    # x: [tb, num_inputs] bf16; weights bf16 (padded); biases f32 (padded); out f32.
    x = x_ref[...]
    h1 = jnp.dot(x, w1_ref[...], preferred_element_type=jnp.float32) + b1_ref[...]
    h1 = jnp.maximum(h1, 0.0).astype(jnp.bfloat16)
    h2 = jnp.dot(h1, w2_ref[...], preferred_element_type=jnp.float32) + b2_ref[...]
    h2 = jnp.maximum(h2, 0.0).astype(jnp.bfloat16)
    h3 = jnp.dot(h2, w3_ref[...], preferred_element_type=jnp.float32) + b3_ref[...]
    o_ref[...] = h3.astype(o_ref.dtype)


def pack_params(params):
    """Pad hidden/output dims to multiples of 128 and cast weights to bf16.

    Zero padding is exact: padded hidden units get bias 0 -> ReLU(0)=0 and feed
    zero weight rows; padded output columns are zero and sliced off.
    """
    def pad2(a, rows, cols):
        r, c = a.shape
        return jnp.pad(a, ((0, rows - r), (0, cols - c)))

    num_inputs = params["w1"].shape[0]
    h1p = _round_up(params["w1"].shape[1], 128)   # 400 -> 512
    h2p = _round_up(params["w2"].shape[1], 128)   # 300 -> 384
    nop = _round_up(params["w3"].shape[1], 128)   # e.g. 8 -> 128

    return {
        "w1": pad2(params["w1"], num_inputs, h1p).astype(jnp.bfloat16),
        "b1": pad2(params["b1"], 1, h1p).astype(jnp.float32),
        "w2": pad2(params["w2"], h1p, h2p).astype(jnp.bfloat16),
        "b2": pad2(params["b2"], 1, h2p).astype(jnp.float32),
        "w3": pad2(params["w3"], h2p, nop).astype(jnp.bfloat16),
        "b3": pad2(params["b3"], 1, nop).astype(jnp.float32),
    }


def mlp_base(x, packed, num_outputs, *, batch_tile=1024):
    """Forward pass of MLPBase.

    x:           [B, num_inputs] float32
    packed:      output of pack_params() (bf16 weights, f32 biases, lane-padded)
    num_outputs: true (unpadded) output width
    returns:     [B, num_outputs] float32
    """
    B, num_inputs = x.shape
    w1, b1 = packed["w1"], packed["b1"]
    w2, b2 = packed["w2"], packed["b2"]
    w3, b3 = packed["w3"], packed["b3"]
    out_pad = w3.shape[1]

    # Explicit batch tile: multiple of 8 sublanes, capped at ~1K rows so the grid
    # has many steps (pipelining + v7x megacore) while staying well inside VMEM
    # on every generation (per-tile footprint << 32 MiB).
    tb = max(8, min(_round_up(batch_tile, 8), _round_up(B, 8)))
    b_pad = _round_up(B, tb)

    xb = x.astype(jnp.bfloat16)
    if b_pad != B:
        xb = jnp.pad(xb, ((0, b_pad - B), (0, 0)))

    grid = (b_pad // tb,)

    def batch_map(i):
        return (i, 0)

    def full_map(i):
        return (0, 0)

    out_padded = pl.pallas_call(
        mlp_kernel,
        out_shape=jax.ShapeDtypeStruct((b_pad, out_pad), jnp.float32),
        grid_spec=pltpu.PrefetchScalarGridSpec(
            num_scalar_prefetch=0,
            grid=grid,
            in_specs=[
                pl.BlockSpec((tb, num_inputs), batch_map),
                pl.BlockSpec(w1.shape, full_map),
                pl.BlockSpec(b1.shape, full_map),
                pl.BlockSpec(w2.shape, full_map),
                pl.BlockSpec(b2.shape, full_map),
                pl.BlockSpec(w3.shape, full_map),
                pl.BlockSpec(b3.shape, full_map),
            ],
            out_specs=pl.BlockSpec((tb, out_pad), batch_map),
        ),
        compiler_params=pltpu.CompilerParams(
            dimension_semantics=("parallel",),
            vmem_limit_bytes=64 * 1024 * 1024,
        ),
    )(xb, w1, b1, w2, b2, w3, b3)

    return out_padded[:B, :num_outputs]


def init_params(key, num_inputs, num_outputs):
    """PyTorch nn.Linear default init: U[-1/sqrt(fan_in), 1/sqrt(fan_in)]."""
    dims = [(num_inputs, 400), (400, 300), (300, num_outputs)]
    params = {}
    for idx, (fan_in, fan_out) in enumerate(dims, start=1):
        key, kw, kb = jax.random.split(key, 3)
        bound = 1.0 / jnp.sqrt(float(fan_in))
        params[f"w{idx}"] = jax.random.uniform(
            kw, (fan_in, fan_out), jnp.float32, minval=-bound, maxval=bound
        )
        params[f"b{idx}"] = jax.random.uniform(
            kb, (1, fan_out), jnp.float32, minval=-bound, maxval=bound
        )
    return params


def mlp_ref(x, params):
    """Reference mirroring the kernel's bf16 cast points (f32 accumulation)."""
    bf = lambda a: a.astype(jnp.bfloat16).astype(jnp.float32)
    h1 = jnp.maximum(bf(x) @ bf(params["w1"]) + params["b1"], 0.0)
    h2 = jnp.maximum(bf(h1) @ bf(params["w2"]) + params["b2"], 0.0)
    return bf(h2) @ bf(params["w3"]) + params["b3"]


if __name__ == "__main__":
    num_inputs, num_outputs = 32, 8
    batch = 8

    key = jax.random.PRNGKey(0)
    key, kx = jax.random.split(key)
    x = jax.random.normal(kx, (batch, num_inputs), jnp.float32)
    params = init_params(key, num_inputs, num_outputs)
    packed = pack_params(params)

    out = mlp_base(x, packed, num_outputs)
    out = jax.block_until_ready(out)

    ref = mlp_ref(x, params)
    assert out.shape == (batch, num_outputs)
    assert jnp.allclose(out, ref, atol=2e-2, rtol=2e-2), float(
        jnp.max(jnp.abs(out - ref))
    )

    print("KERNEL_OK")
</pallas_src>

<mosaic_0001>
module attributes {stable_mosaic.version = 11 : i64} {
  func.func @mlp_kernel(%arg0: i32, %arg1: memref<8x32xbf16, #tpu.memory_space<vmem>>, %arg2: memref<32x512xbf16, #tpu.memory_space<vmem>>, %arg3: memref<1x512xf32, #tpu.memory_space<vmem>>, %arg4: memref<512x384xbf16, #tpu.memory_space<vmem>>, %arg5: memref<1x384xf32, #tpu.memory_space<vmem>>, %arg6: memref<384x128xbf16, #tpu.memory_space<vmem>>, %arg7: memref<1x128xf32, #tpu.memory_space<vmem>>, %arg8: memref<8x128xf32, #tpu.memory_space<vmem>>) attributes {dimension_semantics = [#tpu.dimension_semantics<parallel>], iteration_bounds = array<i64: 1>, scalar_prefetch = 0 : i64, scratch_operands = 0 : i64, tpu.core_type = #tpu.core_type<tc>, window_params = [{transform_indices = @transform_0, window_bounds = array<i64: 8, 32>}, {pipeline_mode = #tpu.pipeline_mode<synchronous>, transform_indices = @transform_1, window_bounds = array<i64: 32, 512>}, {pipeline_mode = #tpu.pipeline_mode<synchronous>, transform_indices = @transform_2, window_bounds = array<i64: 1, 512>}, {pipeline_mode = #tpu.pipeline_mode<synchronous>, transform_indices = @transform_3, window_bounds = array<i64: 512, 384>}, {pipeline_mode = #tpu.pipeline_mode<synchronous>, transform_indices = @transform_4, window_bounds = array<i64: 1, 384>}, {pipeline_mode = #tpu.pipeline_mode<synchronous>, transform_indices = @transform_5, window_bounds = array<i64: 384, 128>}, {pipeline_mode = #tpu.pipeline_mode<synchronous>, transform_indices = @transform_6, window_bounds = array<i64: 1, 128>}, {transform_indices = @transform_7, window_bounds = array<i64: 8, 128>}]} {
    %c0 = arith.constant 0 : index
    %c0_0 = arith.constant 0 : index
    %0 = vector.load %arg1[%c0, %c0_0] : memref<8x32xbf16, #tpu.memory_space<vmem>>, vector<8x32xbf16>
    %c0_1 = arith.constant 0 : index
    %c0_2 = arith.constant 0 : index
    %1 = vector.load %arg2[%c0_1, %c0_2] : memref<32x512xbf16, #tpu.memory_space<vmem>>, vector<32x512xbf16>
    %cst = arith.constant dense<0.000000e+00> : vector<8x512xf32>
    %2 = tpu.matmul %0, %1, %cst {dimension_numbers = #tpu.dot_dimension_numbers<[1], [0], [0], [1], [0, 0, 1, 1], [], []>} : vector<8x32xbf16>, vector<32x512xbf16>, vector<8x512xf32> -> vector<8x512xf32>
    %c0_3 = arith.constant 0 : index
    %c0_4 = arith.constant 0 : index
    %3 = vector.load %arg3[%c0_3, %c0_4] : memref<1x512xf32, #tpu.memory_space<vmem>>, vector<1x512xf32>
    %4 = vector.broadcast %3 : vector<1x512xf32> to vector<8x512xf32>
    %5 = arith.addf %2, %4 : vector<8x512xf32>
    %cst_5 = arith.constant 0.000000e+00 : f32
    %6 = vector.broadcast %cst_5 : f32 to vector<8x512xf32>
    %7 = arith.maximumf %5, %6 : vector<8x512xf32>
    %8 = arith.truncf %7 : vector<8x512xf32> to vector<8x512xbf16>
    %c0_6 = arith.constant 0 : index
    %c0_7 = arith.constant 0 : index
    %9 = vector.load %arg4[%c0_6, %c0_7] : memref<512x384xbf16, #tpu.memory_space<vmem>>, vector<512x384xbf16>
    %cst_8 = arith.constant dense<0.000000e+00> : vector<8x384xf32>
    %10 = tpu.matmul %8, %9, %cst_8 {dimension_numbers = #tpu.dot_dimension_numbers<[1], [0], [0], [1], [0, 0, 1, 1], [], []>} : vector<8x512xbf16>, vector<512x384xbf16>, vector<8x384xf32> -> vector<8x384xf32>
    %c0_9 = arith.constant 0 : index
    %c0_10 = arith.constant 0 : index
    %11 = vector.load %arg5[%c0_9, %c0_10] : memref<1x384xf32, #tpu.memory_space<vmem>>, vector<1x384xf32>
    %12 = vector.broadcast %11 : vector<1x384xf32> to vector<8x384xf32>
    %13 = arith.addf %10, %12 : vector<8x384xf32>
    %cst_11 = arith.constant 0.000000e+00 : f32
    %14 = vector.broadcast %cst_11 : f32 to vector<8x384xf32>
    %15 = arith.maximumf %13, %14 : vector<8x384xf32>
    %16 = arith.truncf %15 : vector<8x384xf32> to vector<8x384xbf16>
    %c0_12 = arith.constant 0 : index
    %c0_13 = arith.constant 0 : index
    %17 = vector.load %arg6[%c0_12, %c0_13] : memref<384x128xbf16, #tpu.memory_space<vmem>>, vector<384x128xbf16>
    %cst_14 = arith.constant dense<0.000000e+00> : vector<8x128xf32>
    %18 = tpu.matmul %16, %17, %cst_14 {dimension_numbers = #tpu.dot_dimension_numbers<[1], [0], [0], [1], [0, 0, 1, 1], [], []>} : vector<8x384xbf16>, vector<384x128xbf16>, vector<8x128xf32> -> vector<8x128xf32>
    %c0_15 = arith.constant 0 : index
    %c0_16 = arith.constant 0 : index
    %19 = vector.load %arg7[%c0_15, %c0_16] : memref<1x128xf32, #tpu.memory_space<vmem>>, vector<1x128xf32>
    %20 = vector.broadcast %19 : vector<1x128xf32> to vector<8x128xf32>
    %21 = arith.addf %18, %20 : vector<8x128xf32>
    %c0_17 = arith.constant 0 : index
    %c0_18 = arith.constant 0 : index
    %22 = vector.load %arg8[%c0_17, %c0_18] : memref<8x128xf32, #tpu.memory_space<vmem>>, vector<8x128xf32>
    tpu.vector_store %arg8[%c0_17, %c0_18], %21 {strides = array<i32>} : memref<8x128xf32, #tpu.memory_space<vmem>>, vector<8x128xf32>,
    return
  }
  func.func @transform_0(%arg0: i32) -> (i32, i32) {
    %c0_i32 = arith.constant 0 : i32
    %c0_i32_0 = arith.constant 0 : i32
    return %arg0, %c0_i32 : i32, i32
  }
  func.func @transform_1(%arg0: i32) -> (i32, i32) {
    %c0_i32 = arith.constant 0 : i32
    %c0_i32_0 = arith.constant 0 : i32
    %c0_i32_1 = arith.constant 0 : i32
    return %c0_i32, %c0_i32_0 : i32, i32
  }
  func.func @transform_2(%arg0: i32) -> (i32, i32) {
    %c0_i32 = arith.constant 0 : i32
    %c0_i32_0 = arith.constant 0 : i32
    %c0_i32_1 = arith.constant 0 : i32
    return %c0_i32, %c0_i32_0 : i32, i32
  }
  func.func @transform_3(%arg0: i32) -> (i32, i32) {
    %c0_i32 = arith.constant 0 : i32
    %c0_i32_0 = arith.constant 0 : i32
    %c0_i32_1 = arith.constant 0 : i32
    return %c0_i32, %c0_i32_0 : i32, i32
  }
  func.func @transform_4(%arg0: i32) -> (i32, i32) {
    %c0_i32 = arith.constant 0 : i32
    %c0_i32_0 = arith.constant 0 : i32
    %c0_i32_1 = arith.constant 0 : i32
    return %c0_i32, %c0_i32_0 : i32, i32
  }
  func.func @transform_5(%arg0: i32) -> (i32, i32) {
    %c0_i32 = arith.constant 0 : i32
    %c0_i32_0 = arith.constant 0 : i32
    %c0_i32_1 = arith.constant 0 : i32
    return %c0_i32, %c0_i32_0 : i32, i32
  }
  func.func @transform_6(%arg0: i32) -> (i32, i32) {
    %c0_i32 = arith.constant 0 : i32
    %c0_i32_0 = arith.constant 0 : i32
    %c0_i32_1 = arith.constant 0 : i32
    return %c0_i32, %c0_i32_0 : i32, i32
  }
  func.func @transform_7(%arg0: i32) -> (i32, i32) {
    %c0_i32 = arith.constant 0 : i32
    %c0_i32_0 = arith.constant 0 : i32
    return %arg0, %c0_i32 : i32, i32
  }
}

</mosaic_0001>

<llo_original>
// kernel: tpu_custom_call.1
$region0: #{tpu_custom_call.1}
  #allocation0 [shape = 'u32[]', space=smem, size = 0x4, offset = 0x4, fixed_abs, tag = 'smem constant byte address 0x4 - core index']
  #allocation1 [shape = 'u32[144,128]{1,0:T(1,128)}', space=vmem, size = 0x12000, scoped, tag = 'internal scratch']
  %s0 = inlined_call_operand.hbm [shape: bf16[8,32], index: 0, kind: input, shape index: {}]
  %s1 = inlined_call_operand.hbm [shape: bf16[32,512], index: 1, kind: input, shape index: {}]
  %s2 = inlined_call_operand.hbm [shape: f32[1,512], index: 2, kind: input, shape index: {}]
  %s3 = inlined_call_operand.hbm [shape: bf16[512,384], index: 3, kind: input, shape index: {}]
  %s4 = inlined_call_operand.hbm [shape: f32[1,384], index: 4, kind: input, shape index: {}]
  %s5 = inlined_call_operand.hbm [shape: bf16[384,128], index: 5, kind: input, shape index: {}]
  %s6 = inlined_call_operand.hbm [shape: f32[1,128], index: 6, kind: input, shape index: {}]
  %s7 = inlined_call_operand.hbm [shape: f32[8,128], index: 7, kind: output, shape index: {}]
  %s8 = sld [smem:[#allocation0]]
  $region66: #{tpu_custom_call.1} parent=0
    _
  %s10 = ssub.s32 1, %s8
  %s11 = scalar_select 0, %s10, %s8
  $region1: #{tpu_custom_call.1} parent=0
    #allocation2 [shape = 'u8[2048]{0}', space=vmem, size = 0x800, scoped, tag = 'input window, operand 0, single buffered']
    #allocation3 [shape = 's32[1]{0}', space=sflag, size = 0x4, scoped, tag = 'scoped memory for tpu_custom_call.1']
    #allocation4 [shape = 's32[1]{0}', space=sflag, size = 0x4, scoped, tag = 'scoped memory for tpu_custom_call.1']
    #allocation5 [shape = 'u8[32768]{0}', space=vmem, size = 0x8000, scoped, tag = 'input window, operand 1, single buffered']
    #allocation6 [shape = 's32[1]{0}', space=sflag, size = 0x4, scoped, tag = 'scoped memory for tpu_custom_call.1']
    #allocation7 [shape = 'u8[2048]{0}', space=vmem, size = 0x800, scoped, tag = 'input window, operand 2, single buffered']
    #allocation8 [shape = 'u8[393216]{0}', space=vmem, size = 0x60000, scoped, tag = 'input window, operand 3, single buffered']
    #allocation9 [shape = 's32[1]{0}', space=sflag, size = 0x4, scoped, tag = 'scoped memory for tpu_custom_call.1']
    #allocation10 [shape = 'u8[1536]{0}', space=vmem, size = 0x800, scoped, tag = 'input window, operand 4, single buffered']
    #allocation11 [shape = 'u8[98304]{0}', space=vmem, size = 0x18000, scoped, tag = 'input window, operand 5, single buffered']
    #allocation12 [shape = 's32[1]{0}', space=sflag, size = 0x4, scoped, tag = 'scoped memory for tpu_custom_call.1']
    #allocation13 [shape = 'u8[512]{0}', space=vmem, size = 0x400, scoped, tag = 'input window, operand 6, single buffered']
    #allocation14 [shape = 'u8[4096]{0}', space=vmem, size = 0x1000, scoped, tag = 'output window, operand 0, single buffered']
    %12 = vsyncpa [#allocation3], 0
    %13 = vsyncpa [#allocation6], 0
    %14 = vsyncpa [#allocation9], 0
    %15 = vsyncpa [#allocation12], 0
    %16 = vsyncpa [#allocation4], 0
    // Predicated region
    $region2: #{tpu_custom_call.1} parent=1 // pred_check
      _
    $region3: #{tpu_custom_call.1} parent=1 // pred_check_branch
      %18 = sbr.rel (0) target = $region5
    $region4: #{tpu_custom_call.1} parent=1 // pred_region
      %s20 = ssub.s32 64, 64
      %21 = vsyncadd [#allocation3], %s20
      %s23 = sshll.u32 [#allocation2], 4
      %s24 = int_to_ptr.vmem [resolvable:$true] %s23
      %26 = dma.hbm_to_vmem [thread:$0]  %s0, 64, %s24, [#allocation3]
    $region5: #{tpu_custom_call.1} parent=1 // pred_fallthru
      _
    // Predicated region
    $region6: #{tpu_custom_call.1} parent=1 // pred_check
      _
    $region7: #{tpu_custom_call.1} parent=1 // pred_check_branch
      %28 = sbr.rel (0) target = $region9
    $region8: #{tpu_custom_call.1} parent=1 // pred_region
      %s30 = ssub.s32 1024, 1024
      %31 = vsyncadd [#allocation6], %s30
      %s32 = sshll.u32 [#allocation5], 4
      %s33 = int_to_ptr.vmem [resolvable:$true] %s32
      %38 = dma.hbm_to_vmem [thread:$0]  %s1, 1024, %s33, [#allocation6], 256, 256, 16
    $region9: #{tpu_custom_call.1} parent=1 // pred_fallthru
      _
    // Predicated region
    $region10: #{tpu_custom_call.1} parent=1 // pred_check
      _
    $region11: #{tpu_custom_call.1} parent=1 // pred_check_branch
      %40 = sbr.rel (0) target = $region13
    $region12: #{tpu_custom_call.1} parent=1 // pred_region
      %s42 = ssub.s32 64, 64
      %43 = vsyncadd [#allocation6], %s42
      %s45 = sshll.u32 [#allocation7], 4
      %s46 = int_to_ptr.vmem [resolvable:$true] %s45
      %48 = dma.hbm_to_vmem [thread:$0]  %s2, 64, %s46, [#allocation6]
    $region13: #{tpu_custom_call.1} parent=1 // pred_fallthru
      _
    // Predicated region
    $region14: #{tpu_custom_call.1} parent=1 // pred_check
      _
    $region15: #{tpu_custom_call.1} parent=1 // pred_check_branch
      %50 = sbr.rel (0) target = $region17
    $region16: #{tpu_custom_call.1} parent=1 // pred_region
      %s52 = ssub.s32 12288, 12288
      %53 = vsyncadd [#allocation9], %s52
      %s54 = sshll.u32 [#allocation8], 4
      %s55 = int_to_ptr.vmem [resolvable:$true] %s54
      %60 = dma.hbm_to_vmem [thread:$0]  %s3, 12288, %s55, [#allocation9], 192, 192, 12
    $region17: #{tpu_custom_call.1} parent=1 // pred_fallthru
      _
    // Predicated region
    $region18: #{tpu_custom_call.1} parent=1 // pred_check
      _
    $region19: #{tpu_custom_call.1} parent=1 // pred_check_branch
      %62 = sbr.rel (0) target = $region21
    $region20: #{tpu_custom_call.1} parent=1 // pred_region
      %s64 = ssub.s32 48, 48
      %65 = vsyncadd [#allocation9], %s64
      %s67 = sshll.u32 [#allocation10], 4
      %s68 = int_to_ptr.vmem [resolvable:$true] %s67
      %70 = dma.hbm_to_vmem [thread:$0]  %s4, 48, %s68, [#allocation9]
    $region21: #{tpu_custom_call.1} parent=1 // pred_fallthru
      _
    // Predicated region
    $region22: #{tpu_custom_call.1} parent=1 // pred_check
      _
    $region23: #{tpu_custom_call.1} parent=1 // pred_check_branch
      %72 = sbr.rel (0) target = $region25
    $region24: #{tpu_custom_call.1} parent=1 // pred_region
      %s74 = ssub.s32 3072, 3072
      %75 = vsyncadd [#allocation12], %s74
      %s76 = sshll.u32 [#allocation11], 4
      %s77 = int_to_ptr.vmem [resolvable:$true] %s76
      %82 = dma.hbm_to_vmem [thread:$0]  %s5, 3072, %s77, [#allocation12], 64, 64, 4
    $region25: #{tpu_custom_call.1} parent=1 // pred_fallthru
      _
    // Predicated region
    $region26: #{tpu_custom_call.1} parent=1 // pred_check
      _
    $region27: #{tpu_custom_call.1} parent=1 // pred_check_branch
      %84 = sbr.rel (0) target = $region29
    $region28: #{tpu_custom_call.1} parent=1 // pred_region
      %s86 = ssub.s32 16, 16
      %87 = vsyncadd [#allocation12], %s86
      %s89 = sshll.u32 [#allocation13], 4
      %s90 = int_to_ptr.vmem [resolvable:$true] %s89
      %92 = dma.hbm_to_vmem [thread:$0]  %s6, 16, %s90, [#allocation12]
    $region29: #{tpu_custom_call.1} parent=1 // pred_fallthru
      _
    // Predicated region
    $region30: #{tpu_custom_call.1} parent=1 // pred_check
      _
    $region31: #{tpu_custom_call.1} parent=1 // pred_check_branch
      %94 = sbr.rel (0) target = $region33
    $region32: #{tpu_custom_call.1} parent=1 // pred_region
      %95 = dma.done [#allocation3], 64
    $region33: #{tpu_custom_call.1} parent=1 // pred_fallthru
      _
    // Predicated region
    $region34: #{tpu_custom_call.1} parent=1 // pred_check
      _
    $region35: #{tpu_custom_call.1} parent=1 // pred_check_branch
      %97 = sbr.rel (0) target = $region37
    $region36: #{tpu_custom_call.1} parent=1 // pred_region
      %98 = dma.done [#allocation6], 1024
    $region37: #{tpu_custom_call.1} parent=1 // pred_fallthru
      _
    // Predicated region
    $region38: #{tpu_custom_call.1} parent=1 // pred_check
      _
    $region39: #{tpu_custom_call.1} parent=1 // pred_check_branch
      %100 = sbr.rel (0) target = $region41
    $region40: #{tpu_custom_call.1} parent=1 // pred_region
      %101 = dma.done [#allocation6], 64
    $region41: #{tpu_custom_call.1} parent=1 // pred_fallthru
      _
    // Predicated region
    $region42: #{tpu_custom_call.1} parent=1 // pred_check
      _
    $region43: #{tpu_custom_call.1} parent=1 // pred_check_branch
      %103 = sbr.rel (0) target = $region45
    $region44: #{tpu_custom_call.1} parent=1 // pred_region
      %104 = dma.done [#allocation9], 12288
    $region45: #{tpu_custom_call.1} parent=1 // pred_fallthru
      _
    // Predicated region
    $region46: #{tpu_custom_call.1} parent=1 // pred_check
      _
    $region47: #{tpu_custom_call.1} parent=1 // pred_check_branch
      %106 = sbr.rel (0) target = $region49
    $region48: #{tpu_custom_call.1} parent=1 // pred_region
      %107 = dma.done [#allocation9], 48
    $region49: #{tpu_custom_call.1} parent=1 // pred_fallthru
      _
    // Predicated region
    $region50: #{tpu_custom_call.1} parent=1 // pred_check
      _
    $region51: #{tpu_custom_call.1} parent=1 // pred_check_branch
      %109 = sbr.rel (0) target = $region53
    $region52: #{tpu_custom_call.1} parent=1 // pred_region
      %110 = dma.done [#allocation12], 3072
    $region53: #{tpu_custom_call.1} parent=1 // pred_fallthru
      _
    // Predicated region
    $region54: #{tpu_custom_call.1} parent=1 // pred_check
      _
    $region55: #{tpu_custom_call.1} parent=1 // pred_check_branch
      %112 = sbr.rel (0) target = $region57
    $region56: #{tpu_custom_call.1} parent=1 // pred_region
      %113 = dma.done [#allocation12], 16
    $region57: #{tpu_custom_call.1} parent=1 // pred_fallthru
      _
    %v115 = vld [vmem:[#allocation2] sm:$0xf]
    %v116 = vld [vmem:[#allocation5] sm:$0xff]
    %v117 = vld [vmem:[#allocation5 + $0x8] sm:$0xff]
    %v118 = vld [vmem:[#allocation5 + $0x10] sm:$0xff]
    %v119 = vld [vmem:[#allocation5 + $0x18] sm:$0xff]
    %v120 = vld [vmem:[#allocation5 + $0x20] sm:$0xff]
    %v121 = vld [vmem:[#allocation5 + $0x28] sm:$0xff]
    %v122 = vld [vmem:[#allocation5 + $0x30] sm:$0xff]
    %v123 = vld [vmem:[#allocation5 + $0x38] sm:$0xff]
    %v124 = vld [vmem:[#allocation7] sm:$0xf]
    %v126 = vlaneseq
    %v127 = vshrl.u32 %v126, 7
    %v128 = vsub.s32 0, %v127
    %v129 = vrot.slane %v124, %v128
    %v130 = vlaneseq
    %v131 = vshrl.u32 %v130, 7
    %v132 = vsub.s32 1, %v131
    %v133 = vrot.slane %v124, %v132
    %v134 = vlaneseq
    %v135 = vshrl.u32 %v134, 7
    %v136 = vsub.s32 2, %v135
    %v137 = vrot.slane %v124, %v136
    %v138 = vlaneseq
    %v139 = vshrl.u32 %v138, 7
    %v140 = vsub.s32 3, %v139
    %v141 = vrot.slane %v124, %v140
    %v154 = vunpack.c.l.b16 %v116
    %v155 = vunpack.c.h.b16 %v116
    %v156 = vunpack.c.l.b16 %v117
    %v157 = vunpack.c.h.b16 %v117
    %v158 = vunpack.c.l.b16 %v118
    %v159 = vunpack.c.h.b16 %v118
    %v160 = vunpack.c.l.b16 %v119
    %v161 = vunpack.c.h.b16 %v119
    %v162 = vunpack.c.l.b16 %v120
    %v163 = vunpack.c.h.b16 %v120
    %v164 = vunpack.c.l.b16 %v121
    %v165 = vunpack.c.h.b16 %v121
    %v166 = vunpack.c.l.b16 %v122
    %v167 = vunpack.c.h.b16 %v122
    %v168 = vunpack.c.l.b16 %v123
    %v169 = vunpack.c.h.b16 %v123
    %v170 = vpack.c.b16 %v158, %v154
    %v171 = vpack.c.b16 %v159, %v155
    %v172 = vpack.c.b16 %v160, %v156
    %v173 = vpack.c.b16 %v161, %v157
    %v174 = vpack.c.b16 %v166, %v162
    %v175 = vpack.c.b16 %v167, %v163
    %v176 = vpack.c.b16 %v168, %v164
    %v177 = vpack.c.b16 %v169, %v165
    %vm186 = vcmask 261120
    %v188 = vsel %vm186, %v115, 0
    %190 = vmatprep.subr.bf16.mxu0 %v171
    %191 = vmatpush1.bf16.msra.mxu0 %v170
    %192 = vmatprep.subr.bf16.mxu0 %v175
    %193 = vmatpush1.bf16.msra.mxu0 %v174
    %194 = vmatprep.subr.bf16.mxu0 0
    %195 = vmatpush1.bf16.msra.mxu0 0
    %196 = vmatprep.subr.bf16.mxu0 0
    %197 = vmatpush1.bf16.msra.mxu0 0
    %198 = vmatprep.subr.bf16.mxu0 0
    %199 = vmatpush1.bf16.msra.mxu0 0
    %200 = vmatprep.subr.bf16.mxu0 0
    %201 = vmatpush1.bf16.msra.mxu0 0
    %202 = vmatprep.subr.bf16.mxu0 0
    %203 = vmatpush1.bf16.msra.mxu0 0
    %204 = vmatprep.subr.bf16.mxu0 0
    %205 = vmatpush1.bf16.msra.mxu0 0
    %206 = vmatprep.subr.bf16.mxu0 0
    %207 = vmatpush1.bf16.msra.mxu0 0
    %208 = vmatprep.subr.bf16.mxu0 0
    %209 = vmatpush1.bf16.msra.mxu0 0
    %210 = vmatprep.subr.bf16.mxu0 0
    %211 = vmatpush1.bf16.msra.mxu0 0
    %212 = vmatprep.subr.bf16.mxu0 0
    %213 = vmatpush1.bf16.msra.mxu0 0
    %214 = vmatprep.subr.bf16.mxu0 0
    %215 = vmatpush1.bf16.msra.mxu0 0
    %216 = vmatprep.subr.bf16.mxu0 0
    %217 = vmatpush1.bf16.msra.mxu0 0
    %218 = vmatprep.subr.bf16.mxu0 0
    %219 = vmatpush1.bf16.msra.mxu0 0
    %220 = vmatprep.subr.bf16.mxu0 0
    %221 = vmatpush1.bf16.msra.mxu0 0
    %222 = vmatprep.mubr.bf16.mxu0 0
    %223 = vmatmul.mubr.bf16.gmra.mrb[0].mxu0 %v188
    %v224 = vpop.f32.mrb[0].mxu0
    %v225 = vadd.f32 %v129, %v224
    %v226 = vpop.f32.mrb[0].mxu0
    %v227 = vadd.f32 %v133, %v226
    %v228 = vpop.f32.mrb[0].mxu0
    %v229 = vpop.f32.mrb[0].mxu0
    %230 = vdwg.mxu0
    %231 = vmatprep.subr.bf16.mxu0 %v173
    %232 = vmatpush1.bf16.msra.mxu0 %v172
    %233 = vmatprep.subr.bf16.mxu0 %v177
    %234 = vmatpush1.bf16.msra.mxu0 %v176
    %235 = vmatprep.subr.bf16.mxu0 0
    %236 = vmatpush1.bf16.msra.mxu0 0
    %237 = vmatprep.subr.bf16.mxu0 0
    %238 = vmatpush1.bf16.msra.mxu0 0
    %239 = vmatprep.subr.bf16.mxu0 0
    %240 = vmatpush1.bf16.msra.mxu0 0
    %241 = vmatprep.subr.bf16.mxu0 0
    %242 = vmatpush1.bf16.msra.mxu0 0
    %243 = vmatprep.subr.bf16.mxu0 0
    %244 = vmatpush1.bf16.msra.mxu0 0
    %245 = vmatprep.subr.bf16.mxu0 0
    %246 = vmatpush1.bf16.msra.mxu0 0
    %247 = vmatprep.subr.bf16.mxu0 0
    %248 = vmatpush1.bf16.msra.mxu0 0
    %249 = vmatprep.subr.bf16.mxu0 0
    %250 = vmatpush1.bf16.msra.mxu0 0
    %251 = vmatprep.subr.bf16.mxu0 0
    %252 = vmatpush1.bf16.msra.mxu0 0
    %253 = vmatprep.subr.bf16.mxu0 0
    %254 = vmatpush1.bf16.msra.mxu0 0
    %255 = vmatprep.subr.bf16.mxu0 0
    %256 = vmatpush1.bf16.msra.mxu0 0
    %257 = vmatprep.subr.bf16.mxu0 0
    %258 = vmatpush1.bf16.msra.mxu0 0
    %259 = vmatprep.subr.bf16.mxu0 0
    %260 = vmatpush1.bf16.msra.mxu0 0
    %261 = vmatprep.subr.bf16.mxu0 0
    %262 = vmatpush1.bf16.msra.mxu0 0
    %263 = vmatprep.mubr.bf16.mxu0 0
    %264 = vmatmul.mubr.bf16.gmra.mrb[0].mxu0 %v188
    %v265 = vpop.f32.mrb[0].mxu0
    %v266 = vadd.f32 %v137, %v265
    %v267 = vpop.f32.mrb[0].mxu0
    %v268 = vadd.f32 %v141, %v267
    %v269 = vpop.f32.mrb[0].mxu0
    %v270 = vpop.f32.mrb[0].mxu0
    %271 = vdwg.mxu0
    %v272 = vmax.f32 %v225, 0.0
    %v273 = vmax.f32 %v227, 0.0
    %v274 = vmax.f32 %v266, 0.0
    %v275 = vmax.f32 %v268, 0.0
    %v276 = vpack.c.bf16 %v272, %v272
    %v277 = vpack.c.bf16 %v273, %v273
    %v278 = vpack.c.bf16 %v274, %v274
    %v279 = vpack.c.bf16 %v275, %v275
    %v280 = vld [vmem:[#allocation8] sm:$0xff]
    %v281 = vld [vmem:[#allocation8 + $0x8] sm:$0xf]
    %v282 = vld [vmem:[#allocation8 + $0xc] sm:$0xff]
    %v283 = vld [vmem:[#allocation8 + $0x14] sm:$0xf]
    %v284 = vld [vmem:[#allocation8 + $0x18] sm:$0xff]
    %v285 = vld [vmem:[#allocation8 + $0x20] sm:$0xf]
    %v286 = vld [vmem:[#allocation8 + $0x24] sm:$0xff]
    %v287 = vld [vmem:[#allocation8 + $0x2c] sm:$0xf]
    %v288 = vld [vmem:[#allocation8 + $0x30] sm:$0xff]
    %v289 = vld [vmem:[#allocation8 + $0x38] sm:$0xf]
    %v290 = vld [vmem:[#allocation8 + $0x3c] sm:$0xff]
    %v291 = vld [vmem:[#allocation8 + $0x44] sm:$0xf]
    %v292 = vld [vmem:[#allocation8 + $0x48] sm:$0xff]
    %v293 = vld [vmem:[#allocation8 + $0x50] sm:$0xf]
    %v294 = vld [vmem:[#allocation8 + $0x54] sm:$0xff]
    %v295 = vld [vmem:[#allocation8 + $0x5c] sm:$0xf]
    %v296 = vld [vmem:[#allocation8 + $0x60] sm:$0xff]
    %v297 = vld [vmem:[#allocation8 + $0x68] sm:$0xf]
    %v298 = vld [vmem:[#allocation8 + $0x6c] sm:$0xff]
    %v299 = vld [vmem:[#allocation8 + $0x74] sm:$0xf]
    %v300 = vld [vmem:[#allocation8 + $0x78] sm:$0xff]
    %v301 = vld [vmem:[#allocation8 + $0x80] sm:$0xf]
    %v302 = vld [vmem:[#allocation8 + $0x84] sm:$0xff]
    %v303 = vld [vmem:[#allocation8 + $0x8c] sm:$0xf]
    %v304 = vld [vmem:[#allocation8 + $0x90] sm:$0xff]
    %v305 = vld [vmem:[#allocation8 + $0x98] sm:$0xf]
    %v306 = vld [vmem:[#allocation8 + $0x9c] sm:$0xff]
    %v307 = vld [vmem:[#allocation8 + $0xa4] sm:$0xf]
    %v308 = vld [vmem:[#allocation8 + $0xa8] sm:$0xff]
    %v309 = vld [vmem:[#allocation8 + $0xb0] sm:$0xf]
    %v310 = vld [vmem:[#allocation8 + $0xb4] sm:$0xff]
    %v311 = vld [vmem:[#allocation8 + $0xbc] sm:$0xf]
    %v312 = vld [vmem:[#allocation8 + $0xc0] sm:$0xff]
    %v313 = vld [vmem:[#allocation8 + $0xc8] sm:$0xf]
    %v314 = vld [vmem:[#allocation8 + $0xcc] sm:$0xff]
    %v315 = vld [vmem:[#allocation8 + $0xd4] sm:$0xf]
    %v316 = vld [vmem:[#allocation8 + $0xd8] sm:$0xff]
    %v317 = vld [vmem:[#allocation8 + $0xe0] sm:$0xf]
    %v318 = vld [vmem:[#allocation8 + $0xe4] sm:$0xff]
    %v319 = vld [vmem:[#allocation8 + $0xec] sm:$0xf]
    %v320 = vld [vmem:[#allocation8 + $0xf0] sm:$0xff]
    %v321 = vld [vmem:[#allocation8 + $0xf8] sm:$0xf]
    %v322 = vld [vmem:[#allocation8 + $0xfc] sm:$0xff]
    %v323 = vld [vmem:[#allocation8 + $0x104] sm:$0xf]
    %v324 = vld [vmem:[#allocation8 + $0x108] sm:$0xff]
    %v325 = vld [vmem:[#allocation8 + $0x110] sm:$0xf]
    %v326 = vld [vmem:[#allocation8 + $0x114] sm:$0xff]
    %v327 = vld [vmem:[#allocation8 + $0x11c] sm:$0xf]
    %v328 = vld [vmem:[#allocation8 + $0x120] sm:$0xff]
    %v329 = vld [vmem:[#allocation8 + $0x128] sm:$0xf]
    %v330 = vld [vmem:[#allocation8 + $0x12c] sm:$0xff]
    %v331 = vld [vmem:[#allocation8 + $0x134] sm:$0xf]
    %v332 = vld [vmem:[#allocation8 + $0x138] sm:$0xff]
    %v333 = vld [vmem:[#allocation8 + $0x140] sm:$0xf]
    %v334 = vld [vmem:[#allocation8 + $0x144] sm:$0xff]
    %v335 = vld [vmem:[#allocation8 + $0x14c] sm:$0xf]
    %v336 = vld [vmem:[#allocation8 + $0x150] sm:$0xff]
    %v337 = vld [vmem:[#allocation8 + $0x158] sm:$0xf]
    %v338 = vld [vmem:[#allocation8 + $0x15c] sm:$0xff]
    %v339 = vld [vmem:[#allocation8 + $0x164] sm:$0xf]
    %v340 = vld [vmem:[#allocation8 + $0x168] sm:$0xff]
    %v341 = vld [vmem:[#allocation8 + $0x170] sm:$0xf]
    %v342 = vld [vmem:[#allocation8 + $0x174] sm:$0xff]
    %v343 = vld [vmem:[#allocation8 + $0x17c] sm:$0xf]
    %v344 = vld [vmem:[#allocation8 + $0x180] sm:$0xff]
    %v345 = vld [vmem:[#allocation8 + $0x188] sm:$0xf]
    %v346 = vld [vmem:[#allocation8 + $0x18c] sm:$0xff]
    %v347 = vld [vmem:[#allocation8 + $0x194] sm:$0xf]
    %v348 = vld [vmem:[#allocation8 + $0x198] sm:$0xff]
    %v349 = vld [vmem:[#allocation8 + $0x1a0] sm:$0xf]
    %v350 = vld [vmem:[#allocation8 + $0x1a4] sm:$0xff]
    %v351 = vld [vmem:[#allocation8 + $0x1ac] sm:$0xf]
    %v352 = vld [vmem:[#allocation8 + $0x1b0] sm:$0xff]
    %v353 = vld [vmem:[#allocation8 + $0x1b8] sm:$0xf]
    %v354 = vld [vmem:[#allocation8 + $0x1bc] sm:$0xff]
    %v355 = vld [vmem:[#allocation8 + $0x1c4] sm:$0xf]
    %v356 = vld [vmem:[#allocation8 + $0x1c8] sm:$0xff]
    %v357 = vld [vmem:[#allocation8 + $0x1d0] sm:$0xf]
    %v358 = vld [vmem:[#allocation8 + $0x1d4] sm:$0xff]
    %v359 = vld [vmem:[#allocation8 + $0x1dc] sm:$0xf]
    %v360 = vld [vmem:[#allocation8 + $0x1e0] sm:$0xff]
    %v361 = vld [vmem:[#allocation8 + $0x1e8] sm:$0xf]
    %v362 = vld [vmem:[#allocation8 + $0x1ec] sm:$0xff]
    %v363 = vld [vmem:[#allocation8 + $0x1f4] sm:$0xf]
    %v364 = vld [vmem:[#allocation8 + $0x1f8] sm:$0xff]
    %v365 = vld [vmem:[#allocation8 + $0x200] sm:$0xf]
    %v366 = vld [vmem:[#allocation8 + $0x204] sm:$0xff]
    %v367 = vld [vmem:[#allocation8 + $0x20c] sm:$0xf]
    %v368 = vld [vmem:[#allocation8 + $0x210] sm:$0xff]
    %v369 = vld [vmem:[#allocation8 + $0x218] sm:$0xf]
    %v370 = vld [vmem:[#allocation8 + $0x21c] sm:$0xff]
    %v371 = vld [vmem:[#allocation8 + $0x224] sm:$0xf]
    %v372 = vld [vmem:[#allocation8 + $0x228] sm:$0xff]
    %v373 = vld [vmem:[#allocation8 + $0x230] sm:$0xf]
    %v374 = vld [vmem:[#allocation8 + $0x234] sm:$0xff]
    %v375 = vld [vmem:[#allocation8 + $0x23c] sm:$0xf]
    %v376 = vld [vmem:[#allocation8 + $0x240] sm:$0xff]
    %v377 = vld [vmem:[#allocation8 + $0x248] sm:$0xf]
    %v378 = vld [vmem:[#allocation8 + $0x24c] sm:$0xff]
    %v379 = vld [vmem:[#allocation8 + $0x254] sm:$0xf]
    %v380 = vld [vmem:[#allocation8 + $0x258] sm:$0xff]
    %v381 = vld [vmem:[#allocation8 + $0x260] sm:$0xf]
    %v382 = vld [vmem:[#allocation8 + $0x264] sm:$0xff]
    %v383 = vld [vmem:[#allocation8 + $0x26c] sm:$0xf]
    %v384 = vld [vmem:[#allocation8 + $0x270] sm:$0xff]
    %v385 = vld [vmem:[#allocation8 + $0x278] sm:$0xf]
    %v386 = vld [vmem:[#allocation8 + $0x27c] sm:$0xff]
    %v387 = vld [vmem:[#allocation8 + $0x284] sm:$0xf]
    %v388 = vld [vmem:[#allocation8 + $0x288] sm:$0xff]
    %v389 = vld [vmem:[#allocation8 + $0x290] sm:$0xf]
    %v390 = vld [vmem:[#allocation8 + $0x294] sm:$0xff]
    %v391 = vld [vmem:[#allocation8 + $0x29c] sm:$0xf]
    %v392 = vld [vmem:[#allocation8 + $0x2a0] sm:$0xff]
    %v393 = vld [vmem:[#allocation8 + $0x2a8] sm:$0xf]
    %v394 = vld [vmem:[#allocation8 + $0x2ac] sm:$0xff]
    %v395 = vld [vmem:[#allocation8 + $0x2b4] sm:$0xf]
    %v396 = vld [vmem:[#allocation8 + $0x2b8] sm:$0xff]
    %v397 = vld [vmem:[#allocation8 + $0x2c0] sm:$0xf]
    %v398 = vld [vmem:[#allocation8 + $0x2c4] sm:$0xff]
    %v399 = vld [vmem:[#allocation8 + $0x2cc] sm:$0xf]
    %v400 = vld [vmem:[#allocation8 + $0x2d0] sm:$0xff]
    %v401 = vld [vmem:[#allocation8 + $0x2d8] sm:$0xf]
    %v402 = vld [vmem:[#allocation8 + $0x2dc] sm:$0xff]
    %v403 = vld [vmem:[#allocation8 + $0x2e4] sm:$0xf]
    %v404 = vld [vmem:[#allocation8 + $0x2e8] sm:$0xff]
    %v405 = vld [vmem:[#allocation8 + $0x2f0] sm:$0xf]
    %v406 = vld [vmem:[#allocation8 + $0x2f4] sm:$0xff]
    %v407 = vld [vmem:[#allocation8 + $0x2fc] sm:$0xf]
    %v408 = vld [vmem:[#allocation10] sm:$0x7]
    %v410 = vlaneseq
    %v411 = vshrl.u32 %v410, 7
    %v412 = vsub.s32 0, %v411
    %v413 = vrot.slane %v408, %v412
    %v414 = vlaneseq
    %v415 = vshrl.u32 %v414, 7
    %v416 = vsub.s32 1, %v415
    %v417 = vrot.slane %v408, %v416
    %v418 = vlaneseq
    %v419 = vshrl.u32 %v418, 7
    %v420 = vsub.s32 2, %v419
    %v421 = vrot.slane %v408, %v420
    %v553 = vunpack.c.l.b16 %v280
    %v554 = vunpack.c.h.b16 %v280
    %v555 = vunpack.c.l.b16 %v281
    %v556 = vunpack.c.l.b16 %v282
    %v557 = vunpack.c.h.b16 %v282
    %v558 = vunpack.c.l.b16 %v283
    %v559 = vunpack.c.l.b16 %v284
    %v560 = vunpack.c.h.b16 %v284
    %v561 = vunpack.c.l.b16 %v285
    %v562 = vunpack.c.l.b16 %v286
    %v563 = vunpack.c.h.b16 %v286
    %v564 = vunpack.c.l.b16 %v287
    %v565 = vunpack.c.l.b16 %v288
    %v566 = vunpack.c.h.b16 %v288
    %v567 = vunpack.c.l.b16 %v289
    %v568 = vunpack.c.l.b16 %v290
    %v569 = vunpack.c.h.b16 %v290
    %v570 = vunpack.c.l.b16 %v291
    %v571 = vunpack.c.l.b16 %v292
    %v572 = vunpack.c.h.b16 %v292
    %v573 = vunpack.c.l.b16 %v293
    %v574 = vunpack.c.l.b16 %v294
    %v575 = vunpack.c.h.b16 %v294
    %v576 = vunpack.c.l.b16 %v295
    %v577 = vunpack.c.l.b16 %v296
    %v578 = vunpack.c.h.b16 %v296
    %v579 = vunpack.c.l.b16 %v297
    %v580 = vunpack.c.l.b16 %v298
    %v581 = vunpack.c.h.b16 %v298
    %v582 = vunpack.c.l.b16 %v299
    %v583 = vunpack.c.l.b16 %v300
    %v584 = vunpack.c.h.b16 %v300
    %v585 = vunpack.c.l.b16 %v301
    %v586 = vunpack.c.l.b16 %v302
    %v587 = vunpack.c.h.b16 %v302
    %v588 = vunpack.c.l.b16 %v303
    %v589 = vunpack.c.l.b16 %v304
    %v590 = vunpack.c.h.b16 %v304
    %v591 = vunpack.c.l.b16 %v305
    %v592 = vunpack.c.l.b16 %v306
    %v593 = vunpack.c.h.b16 %v306
    %v594 = vunpack.c.l.b16 %v307
    %v595 = vunpack.c.l.b16 %v308
    %v596 = vunpack.c.h.b16 %v308
    %v597 = vunpack.c.l.b16 %v309
    %v598 = vunpack.c.l.b16 %v310
    %v599 = vunpack.c.h.b16 %v310
    %v600 = vunpack.c.l.b16 %v311
    %v601 = vunpack.c.l.b16 %v312
    %v602 = vunpack.c.h.b16 %v312
    %v603 = vunpack.c.l.b16 %v313
    %v604 = vunpack.c.l.b16 %v314
    %v605 = vunpack.c.h.b16 %v314
    %v606 = vunpack.c.l.b16 %v315
    %v607 = vunpack.c.l.b16 %v316
    %v608 = vunpack.c.h.b16 %v316
    %v609 = vunpack.c.l.b16 %v317
    %v610 = vunpack.c.l.b16 %v318
    %v611 = vunpack.c.h.b16 %v318
    %v612 = vunpack.c.l.b16 %v319
    %v613 = vunpack.c.l.b16 %v320
    %v614 = vunpack.c.h.b16 %v320
    %v615 = vunpack.c.l.b16 %v321
    %v616 = vunpack.c.l.b16 %v322
    %v617 = vunpack.c.h.b16 %v322
    %v618 = vunpack.c.l.b16 %v323
    %v619 = vunpack.c.l.b16 %v324
    %v620 = vunpack.c.h.b16 %v324
    %v621 = vunpack.c.l.b16 %v325
    %v622 = vunpack.c.l.b16 %v326
    %v623 = vunpack.c.h.b16 %v326
    %v624 = vunpack.c.l.b16 %v327
    %v625 = vunpack.c.l.b16 %v328
    %v626 = vunpack.c.h.b16 %v328
    %v627 = vunpack.c.l.b16 %v329
    %v628 = vunpack.c.l.b16 %v330
    %v629 = vunpack.c.h.b16 %v330
    %v630 = vunpack.c.l.b16 %v331
    %v631 = vunpack.c.l.b16 %v332
    %v632 = vunpack.c.h.b16 %v332
    %v633 = vunpack.c.l.b16 %v333
    %v634 = vunpack.c.l.b16 %v334
    %v635 = vunpack.c.h.b16 %v334
    %v636 = vunpack.c.l.b16 %v335
    %v637 = vunpack.c.l.b16 %v336
    %v638 = vunpack.c.h.b16 %v336
    %v639 = vunpack.c.l.b16 %v337
    %v640 = vunpack.c.l.b16 %v338
    %v641 = vunpack.c.h.b16 %v338
    %v642 = vunpack.c.l.b16 %v339
    %v643 = vunpack.c.l.b16 %v340
    %v644 = vunpack.c.h.b16 %v340
    %v645 = vunpack.c.l.b16 %v341
    %v646 = vunpack.c.l.b16 %v342
    %v647 = vunpack.c.h.b16 %v342
    %v648 = vunpack.c.l.b16 %v343
    %v649 = vunpack.c.l.b16 %v344
    %v650 = vunpack.c.h.b16 %v344
    %v651 = vunpack.c.l.b16 %v345
    %v652 = vunpack.c.l.b16 %v346
    %v653 = vunpack.c.h.b16 %v346
    %v654 = vunpack.c.l.b16 %v347
    %v655 = vunpack.c.l.b16 %v348
    %v656 = vunpack.c.h.b16 %v348
    %v657 = vunpack.c.l.b16 %v349
    %v658 = vunpack.c.l.b16 %v350
    %v659 = vunpack.c.h.b16 %v350
    %v660 = vunpack.c.l.b16 %v351
    %v661 = vunpack.c.l.b16 %v352
    %v662 = vunpack.c.h.b16 %v352
    %v663 = vunpack.c.l.b16 %v353
    %v664 = vunpack.c.l.b16 %v354
    %v665 = vunpack.c.h.b16 %v354
    %v666 = vunpack.c.l.b16 %v355
    %v667 = vunpack.c.l.b16 %v356
    %v668 = vunpack.c.h.b16 %v356
    %v669 = vunpack.c.l.b16 %v357
    %v670 = vunpack.c.l.b16 %v358
    %v671 = vunpack.c.h.b16 %v358
    %v672 = vunpack.c.l.b16 %v359
    %v673 = vunpack.c.l.b16 %v360
    %v674 = vunpack.c.h.b16 %v360
    %v675 = vunpack.c.l.b16 %v361
    %v676 = vunpack.c.l.b16 %v362
    %v677 = vunpack.c.h.b16 %v362
    %v678 = vunpack.c.l.b16 %v363
    %v679 = vunpack.c.l.b16 %v364
    %v680 = vunpack.c.h.b16 %v364
    %v681 = vunpack.c.l.b16 %v365
    %v682 = vunpack.c.l.b16 %v366
    %v683 = vunpack.c.h.b16 %v366
    %v684 = vunpack.c.l.b16 %v367
    %v685 = vunpack.c.l.b16 %v368
    %v686 = vunpack.c.h.b16 %v368
    %v687 = vunpack.c.l.b16 %v369
    %v688 = vunpack.c.l.b16 %v370
    %v689 = vunpack.c.h.b16 %v370
    %v690 = vunpack.c.l.b16 %v371
    %v691 = vunpack.c.l.b16 %v372
    %v692 = vunpack.c.h.b16 %v372
    %v693 = vunpack.c.l.b16 %v373
    %v694 = vunpack.c.l.b16 %v374
    %v695 = vunpack.c.h.b16 %v374
    %v696 = vunpack.c.l.b16 %v375
    %v697 = vunpack.c.l.b16 %v376
    %v698 = vunpack.c.h.b16 %v376
    %v699 = vunpack.c.l.b16 %v377
    %v700 = vunpack.c.l.b16 %v378
    %v701 = vunpack.c.h.b16 %v378
    %v702 = vunpack.c.l.b16 %v379
    %v703 = vunpack.c.l.b16 %v380
    %v704 = vunpack.c.h.b16 %v380
    %v705 = vunpack.c.l.b16 %v381
    %v706 = vunpack.c.l.b16 %v382
    %v707 = vunpack.c.h.b16 %v382
    %v708 = vunpack.c.l.b16 %v383
    %v709 = vunpack.c.l.b16 %v384
    %v710 = vunpack.c.h.b16 %v384
    %v711 = vunpack.c.l.b16 %v385
    %v712 = vunpack.c.l.b16 %v386
    %v713 = vunpack.c.h.b16 %v386
    %v714 = vunpack.c.l.b16 %v387
    %v715 = vunpack.c.l.b16 %v388
    %v716 = vunpack.c.h.b16 %v388
    %v717 = vunpack.c.l.b16 %v389
    %v718 = vunpack.c.l.b16 %v390
    %v719 = vunpack.c.h.b16 %v390
    %v720 = vunpack.c.l.b16 %v391
    %v721 = vunpack.c.l.b16 %v392
    %v722 = vunpack.c.h.b16 %v392
    %v723 = vunpack.c.l.b16 %v393
    %v724 = vunpack.c.l.b16 %v394
    %v725 = vunpack.c.h.b16 %v394
    %v726 = vunpack.c.l.b16 %v395
    %v727 = vunpack.c.l.b16 %v396
    %v728 = vunpack.c.h.b16 %v396
    %v729 = vunpack.c.l.b16 %v397
    %v730 = vunpack.c.l.b16 %v398
    %v731 = vunpack.c.h.b16 %v398
    %v732 = vunpack.c.l.b16 %v399
    %v733 = vunpack.c.l.b16 %v400
    %v734 = vunpack.c.h.b16 %v400
    %v735 = vunpack.c.l.b16 %v401
    %v736 = vunpack.c.l.b16 %v402
    %v737 = vunpack.c.h.b16 %v402
    %v738 = vunpack.c.l.b16 %v403
    %v739 = vunpack.c.l.b16 %v404
    %v740 = vunpack.c.h.b16 %v404
    %v741 = vunpack.c.l.b16 %v405
    %v742 = vunpack.c.l.b16 %v406
    %v743 = vunpack.c.h.b16 %v406
    %v744 = vunpack.c.l.b16 %v407
    %v745 = vpack.c.b16 %v556, %v553
    %v746 = vpack.c.b16 %v557, %v554
    %v747 = vpack.c.b16 %v558, %v555
    %v748 = vpack.c.b16 %v562, %v559
    %v749 = vpack.c.b16 %v563, %v560
    %v750 = vpack.c.b16 %v564, %v561
    %v751 = vpack.c.b16 %v568, %v565
    %v752 = vpack.c.b16 %v569, %v566
    %v753 = vpack.c.b16 %v570, %v567
    %v754 = vpack.c.b16 %v574, %v571
    %v755 = vpack.c.b16 %v575, %v572
    %v756 = vpack.c.b16 %v576, %v573
    %v757 = vpack.c.b16 %v580, %v577
    %v758 = vpack.c.b16 %v581, %v578
    %v759 = vpack.c.b16 %v582, %v579
    %v760 = vpack.c.b16 %v586, %v583
    %v761 = vpack.c.b16 %v587, %v584
    %v762 = vpack.c.b16 %v588, %v585
    %v763 = vpack.c.b16 %v592, %v589
    %v764 = vpack.c.b16 %v593, %v590
    %v765 = vpack.c.b16 %v594, %v591
    %v766 = vpack.c.b16 %v598, %v595
    %v767 = vpack.c.b16 %v599, %v596
    %v768 = vpack.c.b16 %v600, %v597
    %v769 = vpack.c.b16 %v604, %v601
    %v770 = vpack.c.b16 %v605, %v602
    %v771 = vpack.c.b16 %v606, %v603
    %v772 = vpack.c.b16 %v610, %v607
    %v773 = vpack.c.b16 %v611, %v608
    %v774 = vpack.c.b16 %v612, %v609
    %v775 = vpack.c.b16 %v616, %v613
    %v776 = vpack.c.b16 %v617, %v614
    %v777 = vpack.c.b16 %v618, %v615
    %v778 = vpack.c.b16 %v622, %v619
    %v779 = vpack.c.b16 %v623, %v620
    %v780 = vpack.c.b16 %v624, %v621
    %v781 = vpack.c.b16 %v628, %v625
    %v782 = vpack.c.b16 %v629, %v626
    %v783 = vpack.c.b16 %v630, %v627
    %v784 = vpack.c.b16 %v634, %v631
    %v785 = vpack.c.b16 %v635, %v632
    %v786 = vpack.c.b16 %v636, %v633
    %v787 = vpack.c.b16 %v640, %v637
    %v788 = vpack.c.b16 %v641, %v638
    %v789 = vpack.c.b16 %v642, %v639
    %v790 = vpack.c.b16 %v646, %v643
    %v791 = vpack.c.b16 %v647, %v644
    %v792 = vpack.c.b16 %v648, %v645
    %v793 = vpack.c.b16 %v652, %v649
    %v794 = vpack.c.b16 %v653, %v650
    %v795 = vpack.c.b16 %v654, %v651
    %v796 = vpack.c.b16 %v658, %v655
    %v797 = vpack.c.b16 %v659, %v656
    %v798 = vpack.c.b16 %v660, %v657
    %v799 = vpack.c.b16 %v664, %v661
    %v800 = vpack.c.b16 %v665, %v662
    %v801 = vpack.c.b16 %v666, %v663
    %v802 = vpack.c.b16 %v670, %v667
    %v803 = vpack.c.b16 %v671, %v668
    %v804 = vpack.c.b16 %v672, %v669
    %v805 = vpack.c.b16 %v676, %v673
    %v806 = vpack.c.b16 %v677, %v674
    %v807 = vpack.c.b16 %v678, %v675
    %v808 = vpack.c.b16 %v682, %v679
    %v809 = vpack.c.b16 %v683, %v680
    %v810 = vpack.c.b16 %v684, %v681
    %v811 = vpack.c.b16 %v688, %v685
    %v812 = vpack.c.b16 %v689, %v686
    %v813 = vpack.c.b16 %v690, %v687
    %v814 = vpack.c.b16 %v694, %v691
    %v815 = vpack.c.b16 %v695, %v692
    %v816 = vpack.c.b16 %v696, %v693
    %v817 = vpack.c.b16 %v700, %v697
    %v818 = vpack.c.b16 %v701, %v698
    %v819 = vpack.c.b16 %v702, %v699
    %v820 = vpack.c.b16 %v706, %v703
    %v821 = vpack.c.b16 %v707, %v704
    %v822 = vpack.c.b16 %v708, %v705
    %v823 = vpack.c.b16 %v712, %v709
    %v824 = vpack.c.b16 %v713, %v710
    %v825 = vpack.c.b16 %v714, %v711
    %v826 = vpack.c.b16 %v718, %v715
    %v827 = vpack.c.b16 %v719, %v716
    %v828 = vpack.c.b16 %v720, %v717
    %v829 = vpack.c.b16 %v724, %v721
    %v830 = vpack.c.b16 %v725, %v722
    %v831 = vpack.c.b16 %v726, %v723
    %v832 = vpack.c.b16 %v730, %v727
    %v833 = vpack.c.b16 %v731, %v728
    %v834 = vpack.c.b16 %v732, %v729
    %v835 = vpack.c.b16 %v736, %v733
    %v836 = vpack.c.b16 %v737, %v734
    %v837 = vpack.c.b16 %v738, %v735
    %v838 = vpack.c.b16 %v742, %v739
    %v839 = vpack.c.b16 %v743, %v740
    %v840 = vpack.c.b16 %v744, %v741
    %937 = vmatprep.subr.bf16.mxu0 %v746
    %938 = vmatpush1.bf16.msra.mxu0 %v745
    %939 = vmatprep.subr.bf16.mxu0 %v749
    %940 = vmatpush1.bf16.msra.mxu0 %v748
    %941 = vmatprep.subr.bf16.mxu0 %v752
    %942 = vmatpush1.bf16.msra.mxu0 %v751
    %943 = vmatprep.subr.bf16.mxu0 %v755
    %944 = vmatpush1.bf16.msra.mxu0 %v754
    %945 = vmatprep.subr.bf16.mxu0 %v758
    %946 = vmatpush1.bf16.msra.mxu0 %v757
    %947 = vmatprep.subr.bf16.mxu0 %v761
    %948 = vmatpush1.bf16.msra.mxu0 %v760
    %949 = vmatprep.subr.bf16.mxu0 %v764
    %950 = vmatpush1.bf16.msra.mxu0 %v763
    %951 = vmatprep.subr.bf16.mxu0 %v767
    %952 = vmatpush1.bf16.msra.mxu0 %v766
    %953 = vmatprep.subr.bf16.mxu0 %v770
    %954 = vmatpush1.bf16.msra.mxu0 %v769
    %955 = vmatprep.subr.bf16.mxu0 %v773
    %956 = vmatpush1.bf16.msra.mxu0 %v772
    %957 = vmatprep.subr.bf16.mxu0 %v776
    %958 = vmatpush1.bf16.msra.mxu0 %v775
    %959 = vmatprep.subr.bf16.mxu0 %v779
    %960 = vmatpush1.bf16.msra.mxu0 %v778
    %961 = vmatprep.subr.bf16.mxu0 %v782
    %962 = vmatpush1.bf16.msra.mxu0 %v781
    %963 = vmatprep.subr.bf16.mxu0 %v785
    %964 = vmatpush1.bf16.msra.mxu0 %v784
    %965 = vmatprep.subr.bf16.mxu0 %v788
    %966 = vmatpush1.bf16.msra.mxu0 %v787
    %967 = vmatprep.subr.bf16.mxu0 %v791
    %968 = vmatpush1.bf16.msra.mxu0 %v790
    %969 = vmatprep.mubr.bf16.mxu0 %v277
    %970 = vmatmul.mubr.bf16.gmra.mrb[0].mxu0 %v276
    %v971 = vpop.f32.mrb[0].mxu0
    %v972 = vadd.f32 %v413, %v971
    %v973 = vpop.f32.mrb[0].mxu0
    %v974 = vadd.f32 %v417, %v973
    %v975 = vpop.f32.mrb[0].mxu0
    %v976 = vpop.f32.mrb[0].mxu0
    %977 = vdwg.mxu0
    %978 = vmatprep.subr.bf16.mxu0 %v794
    %979 = vmatpush1.bf16.msra.mxu0 %v793
    %980 = vmatprep.subr.bf16.mxu0 %v797
    %981 = vmatpush1.bf16.msra.mxu0 %v796
    %982 = vmatprep.subr.bf16.mxu0 %v800
    %983 = vmatpush1.bf16.msra.mxu0 %v799
    %984 = vmatprep.subr.bf16.mxu0 %v803
    %985 = vmatpush1.bf16.msra.mxu0 %v802
    %986 = vmatprep.subr.bf16.mxu0 %v806
    %987 = vmatpush1.bf16.msra.mxu0 %v805
    %988 = vmatprep.subr.bf16.mxu0 %v809
    %989 = vmatpush1.bf16.msra.mxu0 %v808
    %990 = vmatprep.subr.bf16.mxu0 %v812
    %991 = vmatpush1.bf16.msra.mxu0 %v811
    %992 = vmatprep.subr.bf16.mxu0 %v815
    %993 = vmatpush1.bf16.msra.mxu0 %v814
    %994 = vmatprep.subr.bf16.mxu0 %v818
    %995 = vmatpush1.bf16.msra.mxu0 %v817
    %996 = vmatprep.subr.bf16.mxu0 %v821
    %997 = vmatpush1.bf16.msra.mxu0 %v820
    %998 = vmatprep.subr.bf16.mxu0 %v824
    %999 = vmatpush1.bf16.msra.mxu0 %v823
    %1000 = vmatprep.subr.bf16.mxu0 %v827
    %1001 = vmatpush1.bf16.msra.mxu0 %v826
    %1002 = vmatprep.subr.bf16.mxu0 %v830
    %1003 = vmatpush1.bf16.msra.mxu0 %v829
    %1004 = vmatprep.subr.bf16.mxu0 %v833
    %1005 = vmatpush1.bf16.msra.mxu0 %v832
    %1006 = vmatprep.subr.bf16.mxu0 %v836
    %1007 = vmatpush1.bf16.msra.mxu0 %v835
    %1008 = vmatprep.subr.bf16.mxu0 %v839
    %1009 = vmatpush1.bf16.msra.mxu0 %v838
    %1010 = vmatprep.mubr.bf16.mxu0 %v279
    %1011 = vmatmul.mubr.bf16.gmra.mrb[0].mxu0 %v278
    %v1012 = vpop.f32.mrb[0].mxu0
    %v1013 = vadd.f32 %v972, %v1012
    %v1014 = vpop.f32.mrb[0].mxu0
    %v1015 = vadd.f32 %v974, %v1014
    %v1016 = vpop.f32.mrb[0].mxu0
    %v1017 = vpop.f32.mrb[0].mxu0
    %1018 = vdwg.mxu0
    %1019 = vmatprep.subr.bf16.mxu0 0
    %1020 = vmatpush1.bf16.msra.mxu0 %v747
    %1021 = vmatprep.subr.bf16.mxu0 0
    %1022 = vmatpush1.bf16.msra.mxu0 %v750
    %1023 = vmatprep.subr.bf16.mxu0 0
    %1024 = vmatpush1.bf16.msra.mxu0 %v753
    %1025 = vmatprep.subr.bf16.mxu0 0
    %1026 = vmatpush1.bf16.msra.mxu0 %v756
    %1027 = vmatprep.subr.bf16.mxu0 0
    %1028 = vmatpush1.bf16.msra.mxu0 %v759
    %1029 = vmatprep.subr.bf16.mxu0 0
    %1030 = vmatpush1.bf16.msra.mxu0 %v762
    %1031 = vmatprep.subr.bf16.mxu0 0
    %1032 = vmatpush1.bf16.msra.mxu0 %v765
    %1033 = vmatprep.subr.bf16.mxu0 0
    %1034 = vmatpush1.bf16.msra.mxu0 %v768
    %1035 = vmatprep.subr.bf16.mxu0 0
    %1036 = vmatpush1.bf16.msra.mxu0 %v771
    %1037 = vmatprep.subr.bf16.mxu0 0
    %1038 = vmatpush1.bf16.msra.mxu0 %v774
    %1039 = vmatprep.subr.bf16.mxu0 0
    %1040 = vmatpush1.bf16.msra.mxu0 %v777
    %1041 = vmatprep.subr.bf16.mxu0 0
    %1042 = vmatpush1.bf16.msra.mxu0 %v780
    %1043 = vmatprep.subr.bf16.mxu0 0
    %1044 = vmatpush1.bf16.msra.mxu0 %v783
    %1045 = vmatprep.subr.bf16.mxu0 0
    %1046 = vmatpush1.bf16.msra.mxu0 %v786
    %1047 = vmatprep.subr.bf16.mxu0 0
    %1048 = vmatpush1.bf16.msra.mxu0 %v789
    %1049 = vmatprep.subr.bf16.mxu0 0
    %1050 = vmatpush1.bf16.msra.mxu0 %v792
    %1051 = vmatprep.mubr.bf16.mxu0 %v277
    %1052 = vmatmul.mubr.bf16.gmra.mrb[0].mxu0 %v276
    %v1053 = vpop.f32.mrb[0].mxu0
    %v1054 = vadd.f32 %v421, %v1053
    %v1055 = vpop.f32.mrb[0].mxu0
    %v1056 = vpop.f32.mrb[0].mxu0
    %v1057 = vpop.f32.mrb[0].mxu0
    %1058 = vdwg.mxu0
    %1059 = vmatprep.subr.bf16.mxu0 0
    %1060 = vmatpush1.bf16.msra.mxu0 %v795
    %1061 = vmatprep.subr.bf16.mxu0 0
    %1062 = vmatpush1.bf16.msra.mxu0 %v798
    %1063 = vmatprep.subr.bf16.mxu0 0
    %1064 = vmatpush1.bf16.msra.mxu0 %v801
    %1065 = vmatprep.subr.bf16.mxu0 0
    %1066 = vmatpush1.bf16.msra.mxu0 %v804
    %1067 = vmatprep.subr.bf16.mxu0 0
    %1068 = vmatpush1.bf16.msra.mxu0 %v807
    %1069 = vmatprep.subr.bf16.mxu0 0
    %1070 = vmatpush1.bf16.msra.mxu0 %v810
    %1071 = vmatprep.subr.bf16.mxu0 0
    %1072 = vmatpush1.bf16.msra.mxu0 %v813
    %1073 = vmatprep.subr.bf16.mxu0 0
    %1074 = vmatpush1.bf16.msra.mxu0 %v816
    %1075 = vmatprep.subr.bf16.mxu0 0
    %1076 = vmatpush1.bf16.msra.mxu0 %v819
    %1077 = vmatprep.subr.bf16.mxu0 0
    %1078 = vmatpush1.bf16.msra.mxu0 %v822
    %1079 = vmatprep.subr.bf16.mxu0 0
    %1080 = vmatpush1.bf16.msra.mxu0 %v825
    %1081 = vmatprep.subr.bf16.mxu0 0
    %1082 = vmatpush1.bf16.msra.mxu0 %v828
    %1083 = vmatprep.subr.bf16.mxu0 0
    %1084 = vmatpush1.bf16.msra.mxu0 %v831
    %1085 = vmatprep.subr.bf16.mxu0 0
    %1086 = vmatpush1.bf16.msra.mxu0 %v834
    %1087 = vmatprep.subr.bf16.mxu0 0
    %1088 = vmatpush1.bf16.msra.mxu0 %v837
    %1089 = vmatprep.subr.bf16.mxu0 0
    %1090 = vmatpush1.bf16.msra.mxu0 %v840
    %1091 = vmatprep.mubr.bf16.mxu0 %v279
    %1092 = vmatmul.mubr.bf16.gmra.mrb[0].mxu0 %v278
    %v1093 = vpop.f32.mrb[0].mxu0
    %v1094 = vadd.f32 %v1054, %v1093
    %v1095 = vpop.f32.mrb[0].mxu0
    %v1096 = vpop.f32.mrb[0].mxu0
    %v1097 = vpop.f32.mrb[0].mxu0
    %1098 = vdwg.mxu0
    %v1099 = vmax.f32 %v1013, 0.0
    %v1100 = vmax.f32 %v1015, 0.0
    %v1101 = vmax.f32 %v1094, 0.0
    %v1102 = vpack.c.bf16 %v1099, %v1099
    %v1103 = vpack.c.bf16 %v1100, %v1100
    %v1104 = vpack.c.bf16 %v1101, %v1101
    %v1105 = vld [vmem:[#allocation11] sm:$0xf]
    %v1106 = vld [vmem:[#allocation11 + $0x4] sm:$0xf]
    %v1107 = vld [vmem:[#allocation11 + $0x8] sm:$0xf]
    %v1108 = vld [vmem:[#allocation11 + $0xc] sm:$0xf]
    %v1109 = vld [vmem:[#allocation11 + $0x10] sm:$0xf]
    %v1110 = vld [vmem:[#allocation11 + $0x14] sm:$0xf]
    %v1111 = vld [vmem:[#allocation11 + $0x18] sm:$0xf]
    %v1112 = vld [vmem:[#allocation11 + $0x1c] sm:$0xf]
    %v1113 = vld [vmem:[#allocation11 + $0x20] sm:$0xf]
    %v1114 = vld [vmem:[#allocation11 + $0x24] sm:$0xf]
    %v1115 = vld [vmem:[#allocation11 + $0x28] sm:$0xf]
    %v1116 = vld [vmem:[#allocation11 + $0x2c] sm:$0xf]
    %v1117 = vld [vmem:[#allocation11 + $0x30] sm:$0xf]
    %v1118 = vld [vmem:[#allocation11 + $0x34] sm:$0xf]
    %v1119 = vld [vmem:[#allocation11 + $0x38] sm:$0xf]
    %v1120 = vld [vmem:[#allocation11 + $0x3c] sm:$0xf]
    %v1121 = vld [vmem:[#allocation11 + $0x40] sm:$0xf]
    %v1122 = vld [vmem:[#allocation11 + $0x44] sm:$0xf]
    %v1123 = vld [vmem:[#allocation11 + $0x48] sm:$0xf]
    %v1124 = vld [vmem:[#allocation11 + $0x4c] sm:$0xf]
    %v1125 = vld [vmem:[#allocation11 + $0x50] sm:$0xf]
    %v1126 = vld [vmem:[#allocation11 + $0x54] sm:$0xf]
    %v1127 = vld [vmem:[#allocation11 + $0x58] sm:$0xf]
    %v1128 = vld [vmem:[#allocation11 + $0x5c] sm:$0xf]
    %v1129 = vld [vmem:[#allocation11 + $0x60] sm:$0xf]
    %v1130 = vld [vmem:[#allocation11 + $0x64] sm:$0xf]
    %v1131 = vld [vmem:[#allocation11 + $0x68] sm:$0xf]
    %v1132 = vld [vmem:[#allocation11 + $0x6c] sm:$0xf]
    %v1133 = vld [vmem:[#allocation11 + $0x70] sm:$0xf]
    %v1134 = vld [vmem:[#allocation11 + $0x74] sm:$0xf]
    %v1135 = vld [vmem:[#allocation11 + $0x78] sm:$0xf]
    %v1136 = vld [vmem:[#allocation11 + $0x7c] sm:$0xf]
    %v1137 = vld [vmem:[#allocation11 + $0x80] sm:$0xf]
    %v1138 = vld [vmem:[#allocation11 + $0x84] sm:$0xf]
    %v1139 = vld [vmem:[#allocation11 + $0x88] sm:$0xf]
    %v1140 = vld [vmem:[#allocation11 + $0x8c] sm:$0xf]
    %v1141 = vld [vmem:[#allocation11 + $0x90] sm:$0xf]
    %v1142 = vld [vmem:[#allocation11 + $0x94] sm:$0xf]
    %v1143 = vld [vmem:[#allocation11 + $0x98] sm:$0xf]
    %v1144 = vld [vmem:[#allocation11 + $0x9c] sm:$0xf]
    %v1145 = vld [vmem:[#allocation11 + $0xa0] sm:$0xf]
    %v1146 = vld [vmem:[#allocation11 + $0xa4] sm:$0xf]
    %v1147 = vld [vmem:[#allocation11 + $0xa8] sm:$0xf]
    %v1148 = vld [vmem:[#allocation11 + $0xac] sm:$0xf]
    %v1149 = vld [vmem:[#allocation11 + $0xb0] sm:$0xf]
    %v1150 = vld [vmem:[#allocation11 + $0xb4] sm:$0xf]
    %v1151 = vld [vmem:[#allocation11 + $0xb8] sm:$0xf]
    %v1152 = vld [vmem:[#allocation11 + $0xbc] sm:$0xf]
    %v1153 = vld [vmem:[#allocation13] sm:$0x1]
    %v1155 = vlaneseq
    %v1156 = vshrl.u32 %v1155, 7
    %v1157 = vsub.s32 0, %v1156
    %v1158 = vrot.slane %v1153, %v1157
    %v1208 = vunpack.c.l.b16 %v1105
    %v1209 = vunpack.c.l.b16 %v1106
    %v1210 = vunpack.c.l.b16 %v1107
    %v1211 = vunpack.c.l.b16 %v1108
    %v1212 = vunpack.c.l.b16 %v1109
    %v1213 = vunpack.c.l.b16 %v1110
    %v1214 = vunpack.c.l.b16 %v1111
    %v1215 = vunpack.c.l.b16 %v1112
    %v1216 = vunpack.c.l.b16 %v1113
    %v1217 = vunpack.c.l.b16 %v1114
    %v1218 = vunpack.c.l.b16 %v1115
    %v1219 = vunpack.c.l.b16 %v1116
    %v1220 = vunpack.c.l.b16 %v1117
    %v1221 = vunpack.c.l.b16 %v1118
    %v1222 = vunpack.c.l.b16 %v1119
    %v1223 = vunpack.c.l.b16 %v1120
    %v1224 = vunpack.c.l.b16 %v1121
    %v1225 = vunpack.c.l.b16 %v1122
    %v1226 = vunpack.c.l.b16 %v1123
    %v1227 = vunpack.c.l.b16 %v1124
    %v1228 = vunpack.c.l.b16 %v1125
    %v1229 = vunpack.c.l.b16 %v1126
    %v1230 = vunpack.c.l.b16 %v1127
    %v1231 = vunpack.c.l.b16 %v1128
    %v1232 = vunpack.c.l.b16 %v1129
    %v1233 = vunpack.c.l.b16 %v1130
    %v1234 = vunpack.c.l.b16 %v1131
    %v1235 = vunpack.c.l.b16 %v1132
    %v1236 = vunpack.c.l.b16 %v1133
    %v1237 = vunpack.c.l.b16 %v1134
    %v1238 = vunpack.c.l.b16 %v1135
    %v1239 = vunpack.c.l.b16 %v1136
    %v1240 = vunpack.c.l.b16 %v1137
    %v1241 = vunpack.c.l.b16 %v1138
    %v1242 = vunpack.c.l.b16 %v1139
    %v1243 = vunpack.c.l.b16 %v1140
    %v1244 = vunpack.c.l.b16 %v1141
    %v1245 = vunpack.c.l.b16 %v1142
    %v1246 = vunpack.c.l.b16 %v1143
    %v1247 = vunpack.c.l.b16 %v1144
    %v1248 = vunpack.c.l.b16 %v1145
    %v1249 = vunpack.c.l.b16 %v1146
    %v1250 = vunpack.c.l.b16 %v1147
    %v1251 = vunpack.c.l.b16 %v1148
    %v1252 = vunpack.c.l.b16 %v1149
    %v1253 = vunpack.c.l.b16 %v1150
    %v1254 = vunpack.c.l.b16 %v1151
    %v1255 = vunpack.c.l.b16 %v1152
    %v1256 = vpack.c.b16 %v1209, %v1208
    %v1257 = vpack.c.b16 %v1211, %v1210
    %v1258 = vpack.c.b16 %v1213, %v1212
    %v1259 = vpack.c.b16 %v1215, %v1214
    %v1260 = vpack.c.b16 %v1217, %v1216
    %v1261 = vpack.c.b16 %v1219, %v1218
    %v1262 = vpack.c.b16 %v1221, %v1220
    %v1263 = vpack.c.b16 %v1223, %v1222
    %v1264 = vpack.c.b16 %v1225, %v1224
    %v1265 = vpack.c.b16 %v1227, %v1226
    %v1266 = vpack.c.b16 %v1229, %v1228
    %v1267 = vpack.c.b16 %v1231, %v1230
    %v1268 = vpack.c.b16 %v1233, %v1232
    %v1269 = vpack.c.b16 %v1235, %v1234
    %v1270 = vpack.c.b16 %v1237, %v1236
    %v1271 = vpack.c.b16 %v1239, %v1238
    %v1272 = vpack.c.b16 %v1241, %v1240
    %v1273 = vpack.c.b16 %v1243, %v1242
    %v1274 = vpack.c.b16 %v1245, %v1244
    %v1275 = vpack.c.b16 %v1247, %v1246
    %v1276 = vpack.c.b16 %v1249, %v1248
    %v1277 = vpack.c.b16 %v1251, %v1250
    %v1278 = vpack.c.b16 %v1253, %v1252
    %v1279 = vpack.c.b16 %v1255, %v1254
    %1304 = vmatprep.subr.bf16.mxu0 0
    %1305 = vmatpush1.bf16.msra.mxu0 %v1256
    %1306 = vmatprep.subr.bf16.mxu0 0
    %1307 = vmatpush1.bf16.msra.mxu0 %v1257
    %1308 = vmatprep.subr.bf16.mxu0 0
    %1309 = vmatpush1.bf16.msra.mxu0 %v1258
    %1310 = vmatprep.subr.bf16.mxu0 0
    %1311 = vmatpush1.bf16.msra.mxu0 %v1259
    %1312 = vmatprep.subr.bf16.mxu0 0
    %1313 = vmatpush1.bf16.msra.mxu0 %v1260
    %1314 = vmatprep.subr.bf16.mxu0 0
    %1315 = vmatpush1.bf16.msra.mxu0 %v1261
    %1316 = vmatprep.subr.bf16.mxu0 0
    %1317 = vmatpush1.bf16.msra.mxu0 %v1262
    %1318 = vmatprep.subr.bf16.mxu0 0
    %1319 = vmatpush1.bf16.msra.mxu0 %v1263
    %1320 = vmatprep.subr.bf16.mxu0 0
    %1321 = vmatpush1.bf16.msra.mxu0 %v1264
    %1322 = vmatprep.subr.bf16.mxu0 0
    %1323 = vmatpush1.bf16.msra.mxu0 %v1265
    %1324 = vmatprep.subr.bf16.mxu0 0
    %1325 = vmatpush1.bf16.msra.mxu0 %v1266
    %1326 = vmatprep.subr.bf16.mxu0 0
    %1327 = vmatpush1.bf16.msra.mxu0 %v1267
    %1328 = vmatprep.subr.bf16.mxu0 0
    %1329 = vmatpush1.bf16.msra.mxu0 %v1268
    %1330 = vmatprep.subr.bf16.mxu0 0
    %1331 = vmatpush1.bf16.msra.mxu0 %v1269
    %1332 = vmatprep.subr.bf16.mxu0 0
    %1333 = vmatpush1.bf16.msra.mxu0 %v1270
    %1334 = vmatprep.subr.bf16.mxu0 0
    %1335 = vmatpush1.bf16.msra.mxu0 %v1271
    %1336 = vmatprep.mubr.bf16.mxu0 %v1103
    %1337 = vmatmul.mubr.bf16.gmra.mrb[0].mxu0 %v1102
    %v1338 = vpop.f32.mrb[0].mxu0
    %v1339 = vadd.f32 %v1158, %v1338
    %v1340 = vpop.f32.mrb[0].mxu0
    %v1341 = vpop.f32.mrb[0].mxu0
    %v1342 = vpop.f32.mrb[0].mxu0
    %1343 = vdwg.mxu0
    %1344 = vmatprep.subr.bf16.mxu0 0
    %1345 = vmatpush1.bf16.msra.mxu0 %v1272
    %1346 = vmatprep.subr.bf16.mxu0 0
    %1347 = vmatpush1.bf16.msra.mxu0 %v1273
    %1348 = vmatprep.subr.bf16.mxu0 0
    %1349 = vmatpush1.bf16.msra.mxu0 %v1274
    %1350 = vmatprep.subr.bf16.mxu0 0
    %1351 = vmatpush1.bf16.msra.mxu0 %v1275
    %1352 = vmatprep.subr.bf16.mxu0 0
    %1353 = vmatpush1.bf16.msra.mxu0 %v1276
    %1354 = vmatprep.subr.bf16.mxu0 0
    %1355 = vmatpush1.bf16.msra.mxu0 %v1277
    %1356 = vmatprep.subr.bf16.mxu0 0
    %1357 = vmatpush1.bf16.msra.mxu0 %v1278
    %1358 = vmatprep.subr.bf16.mxu0 0
    %1359 = vmatpush1.bf16.msra.mxu0 %v1279
    %1360 = vmatprep.subr.bf16.mxu0 0
    %1361 = vmatpush1.bf16.msra.mxu0 0
    %1362 = vmatprep.subr.bf16.mxu0 0
    %1363 = vmatpush1.bf16.msra.mxu0 0
    %1364 = vmatprep.subr.bf16.mxu0 0
    %1365 = vmatpush1.bf16.msra.mxu0 0
    %1366 = vmatprep.subr.bf16.mxu0 0
    %1367 = vmatpush1.bf16.msra.mxu0 0
    %1368 = vmatprep.subr.bf16.mxu0 0
    %1369 = vmatpush1.bf16.msra.mxu0 0
    %1370 = vmatprep.subr.bf16.mxu0 0
    %1371 = vmatpush1.bf16.msra.mxu0 0
    %1372 = vmatprep.subr.bf16.mxu0 0
    %1373 = vmatpush1.bf16.msra.mxu0 0
    %1374 = vmatprep.subr.bf16.mxu0 0
    %1375 = vmatpush1.bf16.msra.mxu0 0
    %1376 = vmatprep.mubr.bf16.mxu0 0
    %1377 = vmatmul.mubr.bf16.gmra.mrb[0].mxu0 %v1104
    %v1378 = vpop.f32.mrb[0].mxu0
    %v1379 = vadd.f32 %v1339, %v1378
    %v1380 = vpop.f32.mrb[0].mxu0
    %v1381 = vpop.f32.mrb[0].mxu0
    %v1382 = vpop.f32.mrb[0].mxu0
    %1383 = vdwg.mxu0
    %1384 = vst [vmem:[#allocation14] sm:$0xff] %v1379
    // Predicated region
    $region58: #{tpu_custom_call.1} parent=1 // pred_check
      _
    $region59: #{tpu_custom_call.1} parent=1 // pred_check_branch
      %1386 = sbr.rel (0) target = $region61
    $region60: #{tpu_custom_call.1} parent=1 // pred_region
      %s1388 = ssub.s32 128, 128
      %1389 = vsyncadd [#allocation4], %s1388
      %s1391 = sshll.u32 [#allocation14], 4
      %s1392 = int_to_ptr.vmem [resolvable:$true] %s1391
      %1394 = dma.vmem_to_hbm [thread:$0]  %s1392, 128, %s7, [#allocation4]
    $region61: #{tpu_custom_call.1} parent=1 // pred_fallthru
      _
    // Predicated region
    $region62: #{tpu_custom_call.1} parent=1 // pred_check
      _
    $region63: #{tpu_custom_call.1} parent=1 // pred_check_branch
      %1396 = sbr.rel (0) target = $region65
    $region64: #{tpu_custom_call.1} parent=1 // pred_region
      %1397 = dma.done [#allocation4], 128
    $region65: #{tpu_custom_call.1} parent=1 // pred_fallthru
      _
    %1398 = vsyncpa [#allocation3], 1
    %1399 = vsyncpa [#allocation6], 1
    %1400 = vsyncpa [#allocation9], 1
    %1401 = vsyncpa [#allocation12], 1
    %1402 = vsyncpa [#allocation4], 1

</llo_original>
